<compile_context>
chip_gen: v7x
topology: tpu7x:2x2x1
jax: 0.10.0
libtpu: 0.0.40
codegen_flags: <defaults>
</compile_context>

<pallas_src>
import functools

import jax
import jax.numpy as jnp
from jax.experimental import pallas as pl
from jax.experimental.pallas import tpu as pltpu


def _round_up(n, m):
    return ((n + m - 1) // m) * m


def _double_conv_kernel(mask_ref, xp_ref, w1_ref, b1_ref, w2_ref, b2_ref,
                        o_ref, y1_ref, xcol_ref, ycol_ref,
                        *, Wp, Sp_al, ext_L):
    # mask_ref : (1, Sp_al)            f32 interior mask (precomputed, resident)
    # xp_ref   : (Cin_p, Sp_ext)       zero-extended flattened padded input
    # w1_ref   : (Cmid_p, 9*Cin_p)     conv1 weights, taps stacked along K (BN folded)
    # b1_ref   : (Cmid_p, 1)           conv1 bias (BN folded), f32 column
    # w2_ref   : (Cout_p, 9*Cmid_p)    conv2 weights, taps stacked along K (BN folded)
    # b2_ref   : (Cout_p, 1)           conv2 bias (BN folded), f32 column
    # o_ref    : (Cout_p, Sp_al)       output on the padded grid (ring discarded)
    # y1_ref   : (Cmid_p, Sp_ext)      scratch: conv1 output in extended layout
    # xcol_ref : (9*Cin_p, Sp_al)      scratch: conv1 im2col (stacked taps)
    # ycol_ref : (9*Cmid_p, Sp_al)     scratch: conv2 im2col (stacked taps)
    cin_p = xp_ref.shape[0]
    cmid_p = y1_ref.shape[0]
    ext_R = y1_ref.shape[1] - ext_L - Sp_al
    base = ext_L - (Wp + 1)          # static; all tap slices are in-bounds
    mask = mask_ref[...]

    # ---- conv1 (3x3, pad 1) + folded BN + ReLU: one MXU push, K = 9*Cin_p ----
    for k in range(9):
        dh, dw = k // 3, k % 3
        start = base + dh * Wp + dw                       # static slice start
        xcol_ref[k * cin_p:(k + 1) * cin_p, :] = xp_ref[:, start:start + Sp_al]
    acc1 = jnp.dot(w1_ref[...], xcol_ref[...],
                   preferred_element_type=jnp.float32)    # (Cmid_p, Sp_al) f32
    y1 = jnp.maximum(acc1 + b1_ref[...], 0.0) * mask      # bias + ReLU, re-zero ring

    # Stage conv1 output in the extended flat layout; interior start is a
    # multiple of 128 -> unmasked lane-aligned store.
    y1_ref[:, ext_L:ext_L + Sp_al] = y1.astype(y1_ref.dtype)
    # Zero only the two narrow edge strips (never the whole scratch).
    y1_ref[:, 0:ext_L] = jnp.zeros((cmid_p, ext_L), y1_ref.dtype)
    y1_ref[:, ext_L + Sp_al:ext_L + Sp_al + ext_R] = jnp.zeros(
        (cmid_p, ext_R), y1_ref.dtype)

    # ---- conv2 (3x3, pad 1) + folded BN + ReLU: one MXU push, K = 9*Cmid_p ----
    for k in range(9):
        dh, dw = k // 3, k % 3
        start = base + dh * Wp + dw
        ycol_ref[k * cmid_p:(k + 1) * cmid_p, :] = y1_ref[:, start:start + Sp_al]
    acc2 = jnp.dot(w2_ref[...], ycol_ref[...],
                   preferred_element_type=jnp.float32)
    # The padding ring is sliced off in the wrapper -> no interior mask here.
    o_ref[...] = jnp.maximum(acc2 + b2_ref[...], 0.0).astype(o_ref.dtype)


@functools.partial(jax.jit, static_argnames=("compute_dtype",))
def double_conv(x, w1, b1, g1, beta1, m1, v1, w2, b2, g2, beta2, m2, v2,
                compute_dtype="float32"):
    """x: (B, Cin, H, W) NCHW.  Returns (B, Cout, H, W).

    w1: (Cmid, Cin, 3, 3), b1: (Cmid,), g1/beta1/m1/v1: BN1 gamma/beta/mean/var
    w2: (Cout, Cmid, 3, 3), b2: (Cout,), g2/beta2/m2/v2: BN2 gamma/beta/mean/var
    compute_dtype: "float32" or "bfloat16" (matmul operands; accumulation f32).
    """
    eps = 1e-5
    cdt = jnp.bfloat16 if compute_dtype == "bfloat16" else jnp.float32
    sub = 16 if cdt == jnp.bfloat16 else 8            # sublane packing multiple

    B, Cin, H, W = x.shape
    Cmid = w1.shape[0]
    Cout = w2.shape[0]
    Hp, Wp = H + 2, W + 2
    Sp = Hp * Wp
    Sp_al = _round_up(Sp, 128)                        # lane-aligned compute width
    ext_L = _round_up(Wp + 1, 128)                    # 128-aligned interior start
    ext_R = _round_up(Wp + 1, 128)
    Sp_ext = ext_L + Sp_al + ext_R
    Cin_p = _round_up(Cin, sub)
    Cmid_p = _round_up(Cmid, sub)
    Cout_p = _round_up(Cout, sub)

    # --- fold BatchNorm (eval mode) into the convolutions (wrapper-side) ---
    s1 = g1 / jnp.sqrt(v1 + eps)
    w1f = w1 * s1[:, None, None, None]
    b1f = (b1 - m1) * s1 + beta1
    s2 = g2 / jnp.sqrt(v2 + eps)
    w2f = w2 * s2[:, None, None, None]
    b2f = (b2 - m2) * s2 + beta2

    # Stacked-tap weight matrices: row = out channel, col = k*C_in_p + in
    # channel, with tap k = 3*dh + dw (matches the kernel's slice order).
    w1m = jnp.transpose(w1f, (0, 2, 3, 1))                       # (Cmid,3,3,Cin)
    w1m = jnp.pad(w1m, ((0, Cmid_p - Cmid), (0, 0), (0, 0), (0, Cin_p - Cin)))
    w1m = w1m.reshape(Cmid_p, 9 * Cin_p).astype(cdt)
    w2m = jnp.transpose(w2f, (0, 2, 3, 1))                       # (Cout,3,3,Cmid)
    w2m = jnp.pad(w2m, ((0, Cout_p - Cout), (0, 0), (0, 0), (0, Cmid_p - Cmid)))
    w2m = w2m.reshape(Cout_p, 9 * Cmid_p).astype(cdt)

    b1c = jnp.pad(b1f, (0, Cmid_p - Cmid)).reshape(Cmid_p, 1).astype(jnp.float32)
    b2c = jnp.pad(b2f, (0, Cout_p - Cout)).reshape(Cout_p, 1).astype(jnp.float32)

    # Zero-pad spatially (the conv's padding=1), pad channels to the sublane
    # multiple, flatten lane-dense, and place at offset ext_L (128-aligned) in
    # a zero slab so every 3x3 tap is a static, in-bounds slice.
    xp = jnp.pad(x, ((0, 0), (0, Cin_p - Cin), (1, 1), (1, 1)))
    xp_flat = xp.reshape(B, Cin_p, Sp)
    xp_ext = jnp.pad(xp_flat,
                     ((0, 0), (0, 0), (ext_L, Sp_ext - ext_L - Sp))).astype(cdt)

    # Interior mask over the padded grid, precomputed once (no in-kernel
    # integer div/mod); zero for lanes >= Sp and on the padding ring.
    p = jnp.arange(Sp_al)
    row, col = p // Wp, p % Wp
    interior = (p < Sp) & (row >= 1) & (row <= Hp - 2) & (col >= 1) & (col <= Wp - 2)
    mask = interior.astype(jnp.float32).reshape(1, Sp_al)

    kernel = functools.partial(_double_conv_kernel, Wp=Wp, Sp_al=Sp_al, ext_L=ext_L)

    out_flat = pl.pallas_call(
        kernel,
        out_shape=jax.ShapeDtypeStruct((B, Cout_p, Sp_al), x.dtype),
        grid_spec=pltpu.PrefetchScalarGridSpec(
            num_scalar_prefetch=0,
            grid=(B,),
            in_specs=[
                pl.BlockSpec((1, Sp_al), lambda b: (0, 0)),                # mask
                pl.BlockSpec((None, Cin_p, Sp_ext), lambda b: (b, 0, 0)),  # x[b]
                pl.BlockSpec((Cmid_p, 9 * Cin_p), lambda b: (0, 0)),       # W1
                pl.BlockSpec((Cmid_p, 1), lambda b: (0, 0)),               # b1
                pl.BlockSpec((Cout_p, 9 * Cmid_p), lambda b: (0, 0)),      # W2
                pl.BlockSpec((Cout_p, 1), lambda b: (0, 0)),               # b2
            ],
            out_specs=pl.BlockSpec((None, Cout_p, Sp_al), lambda b: (b, 0, 0)),
            scratch_shapes=[
                pltpu.VMEM((Cmid_p, Sp_ext), cdt),        # y1 (extended layout)
                pltpu.VMEM((9 * Cin_p, Sp_al), cdt),      # conv1 im2col
                pltpu.VMEM((9 * Cmid_p, Sp_al), cdt),     # conv2 im2col
            ],
        ),
        compiler_params=pltpu.CompilerParams(
            dimension_semantics=("parallel",),
            vmem_limit_bytes=32 * 1024 * 1024,
        ),
    )(mask, xp_ext, w1m, b1c, w2m, b2c)

    # Back to NCHW: drop channel padding, lane padding, and the padding ring.
    out = out_flat[:, :Cout, :Sp].reshape(B, Cout, Hp, Wp)[:, :, 1:H + 1, 1:W + 1]
    return out


def _reference(x, w1, b1, g1, beta1, m1, v1, w2, b2, g2, beta2, m2, v2):
    """Pure-JAX reference reproducing the PyTorch forward (eval-mode BN)."""
    eps = 1e-5

    def conv_bn_relu(h, w, b, g, bt, m, v):
        y = jax.lax.conv_general_dilated(
            h, w, window_strides=(1, 1), padding=((1, 1), (1, 1)),
            dimension_numbers=("NCHW", "OIHW", "NCHW"),
            precision=jax.lax.Precision.HIGHEST)
        y = y + b.reshape(1, -1, 1, 1)
        y = (y - m.reshape(1, -1, 1, 1)) / jnp.sqrt(v.reshape(1, -1, 1, 1) + eps)
        y = y * g.reshape(1, -1, 1, 1) + bt.reshape(1, -1, 1, 1)
        return jnp.maximum(y, 0.0)

    h = conv_bn_relu(x, w1, b1, g1, beta1, m1, v1)
    return conv_bn_relu(h, w2, b2, g2, beta2, m2, v2)


if __name__ == "__main__":
    # Small shapes consistent with DoubleConv(in_channels=4, out_channels=8).
    B, Cin, Cmid, Cout, H, W = 2, 4, 8, 8, 16, 16

    key = jax.random.PRNGKey(0)
    ks = jax.random.split(key, 13)

    x = jax.random.normal(ks[0], (B, Cin, H, W), dtype=jnp.float32)

    # conv1 + BN1 parameters (synthetic, matching nn.Module shapes)
    w1 = jax.random.normal(ks[1], (Cmid, Cin, 3, 3), dtype=jnp.float32) * 0.2
    b1 = jax.random.normal(ks[2], (Cmid,), dtype=jnp.float32) * 0.1
    g1 = 1.0 + 0.1 * jax.random.normal(ks[3], (Cmid,), dtype=jnp.float32)
    beta1 = 0.1 * jax.random.normal(ks[4], (Cmid,), dtype=jnp.float32)
    m1 = 0.1 * jax.random.normal(ks[5], (Cmid,), dtype=jnp.float32)
    v1 = jax.random.uniform(ks[6], (Cmid,), jnp.float32, 0.5, 1.5)

    # conv2 + BN2 parameters
    w2 = jax.random.normal(ks[7], (Cout, Cmid, 3, 3), dtype=jnp.float32) * 0.2
    b2 = jax.random.normal(ks[8], (Cout,), dtype=jnp.float32) * 0.1
    g2 = 1.0 + 0.1 * jax.random.normal(ks[9], (Cout,), dtype=jnp.float32)
    beta2 = 0.1 * jax.random.normal(ks[10], (Cout,), dtype=jnp.float32)
    m2 = 0.1 * jax.random.normal(ks[11], (Cout,), dtype=jnp.float32)
    v2 = jax.random.uniform(ks[12], (Cout,), jnp.float32, 0.5, 1.5)

    ref = _reference(x, w1, b1, g1, beta1, m1, v1, w2, b2, g2, beta2, m2, v2)

    # f32 operand path (default): tight tolerance.
    out = double_conv(x, w1, b1, g1, beta1, m1, v1, w2, b2, g2, beta2, m2, v2)
    out = jax.block_until_ready(out)
    assert out.shape == (B, Cout, H, W), out.shape
    assert jnp.allclose(out, ref, atol=1e-3, rtol=1e-3), (
        "f32 mismatch vs reference; max abs err = "
        f"{float(jnp.max(jnp.abs(out - ref)))}")

    # bf16 operand path (v6e/v7x MXU-native): looser numeric tolerance.
    out_bf = double_conv(x, w1, b1, g1, beta1, m1, v1, w2, b2, g2, beta2, m2, v2,
                         compute_dtype="bfloat16")
    out_bf = jax.block_until_ready(out_bf)
    assert out_bf.shape == (B, Cout, H, W), out_bf.shape
    assert jnp.allclose(out_bf, ref, atol=0.15, rtol=0.05), (
        "bf16 mismatch vs reference; max abs err = "
        f"{float(jnp.max(jnp.abs(out_bf - ref)))}")

    print("KERNEL_OK")
</pallas_src>

<mosaic_0001>
module attributes {stable_mosaic.version = 11 : i64} {
  func.func @_double_conv_kernel(%arg0: i32, %arg1: memref<1x384xf32, #tpu.memory_space<vmem>>, %arg2: memref<1x8x640xf32, #tpu.memory_space<vmem>>, %arg3: memref<8x72xf32, #tpu.memory_space<vmem>>, %arg4: memref<8x1xf32, #tpu.memory_space<vmem>>, %arg5: memref<8x72xf32, #tpu.memory_space<vmem>>, %arg6: memref<8x1xf32, #tpu.memory_space<vmem>>, %arg7: memref<1x8x384xf32, #tpu.memory_space<vmem>>, %arg8: memref<8x640xf32, #tpu.memory_space<vmem>>, %arg9: memref<72x384xf32, #tpu.memory_space<vmem>>, %arg10: memref<72x384xf32, #tpu.memory_space<vmem>>) attributes {dimension_semantics = [#tpu.dimension_semantics<parallel>], iteration_bounds = array<i64: 2>, scalar_prefetch = 0 : i64, scratch_operands = 3 : i64, tpu.core_type = #tpu.core_type<tc>, window_params = [{pipeline_mode = #tpu.pipeline_mode<synchronous>, transform_indices = @transform_0, window_bounds = array<i64: 1, 384>}, {transform_indices = @transform_1, window_bounds = array<i64: 1, 8, 640>}, {pipeline_mode = #tpu.pipeline_mode<synchronous>, transform_indices = @transform_2, window_bounds = array<i64: 8, 72>}, {pipeline_mode = #tpu.pipeline_mode<synchronous>, transform_indices = @transform_3, window_bounds = array<i64: 8, 1>}, {pipeline_mode = #tpu.pipeline_mode<synchronous>, transform_indices = @transform_4, window_bounds = array<i64: 8, 72>}, {pipeline_mode = #tpu.pipeline_mode<synchronous>, transform_indices = @transform_5, window_bounds = array<i64: 8, 1>}, {transform_indices = @transform_6, window_bounds = array<i64: 1, 8, 384>}]} {
    %c0 = arith.constant 0 : index
    %c0_0 = arith.constant 0 : index
    %0 = vector.load %arg1[%c0, %c0_0] : memref<1x384xf32, #tpu.memory_space<vmem>>, vector<1x384xf32>
    %c0_1 = arith.constant 0 : index
    %c0_2 = arith.constant 0 : index
    %c109 = arith.constant 109 : index
    %1 = vector.load %arg2[%c0_1, %c0_2, %c109] : memref<1x8x640xf32, #tpu.memory_space<vmem>>, vector<1x8x384xf32>
    %2 = vector.shape_cast %1 : vector<1x8x384xf32> to vector<8x384xf32>
    %c0_3 = arith.constant 0 : index
    %c0_4 = arith.constant 0 : index
    %3 = vector.load %arg9[%c0_3, %c0_4] : memref<72x384xf32, #tpu.memory_space<vmem>>, vector<8x384xf32>
    tpu.vector_store %arg9[%c0_3, %c0_4], %2 {strides = array<i32>} : memref<72x384xf32, #tpu.memory_space<vmem>>, vector<8x384xf32>,
    %c0_5 = arith.constant 0 : index
    %c0_6 = arith.constant 0 : index
    %c110 = arith.constant 110 : index
    %4 = vector.load %arg2[%c0_5, %c0_6, %c110] : memref<1x8x640xf32, #tpu.memory_space<vmem>>, vector<1x8x384xf32>
    %5 = vector.shape_cast %4 : vector<1x8x384xf32> to vector<8x384xf32>
    %c8 = arith.constant 8 : index
    %c0_7 = arith.constant 0 : index
    %6 = vector.load %arg9[%c8, %c0_7] : memref<72x384xf32, #tpu.memory_space<vmem>>, vector<8x384xf32>
    tpu.vector_store %arg9[%c8, %c0_7], %5 {strides = array<i32>} : memref<72x384xf32, #tpu.memory_space<vmem>>, vector<8x384xf32>,
    %c0_8 = arith.constant 0 : index
    %c0_9 = arith.constant 0 : index
    %c111 = arith.constant 111 : index
    %7 = vector.load %arg2[%c0_8, %c0_9, %c111] : memref<1x8x640xf32, #tpu.memory_space<vmem>>, vector<1x8x384xf32>
    %8 = vector.shape_cast %7 : vector<1x8x384xf32> to vector<8x384xf32>
    %c16 = arith.constant 16 : index
    %c0_10 = arith.constant 0 : index
    %9 = vector.load %arg9[%c16, %c0_10] : memref<72x384xf32, #tpu.memory_space<vmem>>, vector<8x384xf32>
    tpu.vector_store %arg9[%c16, %c0_10], %8 {strides = array<i32>} : memref<72x384xf32, #tpu.memory_space<vmem>>, vector<8x384xf32>,
    %c0_11 = arith.constant 0 : index
    %c0_12 = arith.constant 0 : index
    %c127 = arith.constant 127 : index
    %10 = vector.load %arg2[%c0_11, %c0_12, %c127] : memref<1x8x640xf32, #tpu.memory_space<vmem>>, vector<1x8x384xf32>
    %11 = vector.shape_cast %10 : vector<1x8x384xf32> to vector<8x384xf32>
    %c24 = arith.constant 24 : index
    %c0_13 = arith.constant 0 : index
    %12 = vector.load %arg9[%c24, %c0_13] : memref<72x384xf32, #tpu.memory_space<vmem>>, vector<8x384xf32>
    tpu.vector_store %arg9[%c24, %c0_13], %11 {strides = array<i32>} : memref<72x384xf32, #tpu.memory_space<vmem>>, vector<8x384xf32>,
    %c0_14 = arith.constant 0 : index
    %c0_15 = arith.constant 0 : index
    %c128 = arith.constant 128 : index
    %13 = vector.load %arg2[%c0_14, %c0_15, %c128] : memref<1x8x640xf32, #tpu.memory_space<vmem>>, vector<1x8x384xf32>
    %14 = vector.shape_cast %13 : vector<1x8x384xf32> to vector<8x384xf32>
    %c32 = arith.constant 32 : index
    %c0_16 = arith.constant 0 : index
    %15 = vector.load %arg9[%c32, %c0_16] : memref<72x384xf32, #tpu.memory_space<vmem>>, vector<8x384xf32>
    tpu.vector_store %arg9[%c32, %c0_16], %14 {strides = array<i32>} : memref<72x384xf32, #tpu.memory_space<vmem>>, vector<8x384xf32>,
    %c0_17 = arith.constant 0 : index
    %c0_18 = arith.constant 0 : index
    %c129 = arith.constant 129 : index
    %16 = vector.load %arg2[%c0_17, %c0_18, %c129] : memref<1x8x640xf32, #tpu.memory_space<vmem>>, vector<1x8x384xf32>
    %17 = vector.shape_cast %16 : vector<1x8x384xf32> to vector<8x384xf32>
    %c40 = arith.constant 40 : index
    %c0_19 = arith.constant 0 : index
    %18 = vector.load %arg9[%c40, %c0_19] : memref<72x384xf32, #tpu.memory_space<vmem>>, vector<8x384xf32>
    tpu.vector_store %arg9[%c40, %c0_19], %17 {strides = array<i32>} : memref<72x384xf32, #tpu.memory_space<vmem>>, vector<8x384xf32>,
    %c0_20 = arith.constant 0 : index
    %c0_21 = arith.constant 0 : index
    %c145 = arith.constant 145 : index
    %19 = vector.load %arg2[%c0_20, %c0_21, %c145] : memref<1x8x640xf32, #tpu.memory_space<vmem>>, vector<1x8x384xf32>
    %20 = vector.shape_cast %19 : vector<1x8x384xf32> to vector<8x384xf32>
    %c48 = arith.constant 48 : index
    %c0_22 = arith.constant 0 : index
    %21 = vector.load %arg9[%c48, %c0_22] : memref<72x384xf32, #tpu.memory_space<vmem>>, vector<8x384xf32>
    tpu.vector_store %arg9[%c48, %c0_22], %20 {strides = array<i32>} : memref<72x384xf32, #tpu.memory_space<vmem>>, vector<8x384xf32>,
    %c0_23 = arith.constant 0 : index
    %c0_24 = arith.constant 0 : index
    %c146 = arith.constant 146 : index
    %22 = vector.load %arg2[%c0_23, %c0_24, %c146] : memref<1x8x640xf32, #tpu.memory_space<vmem>>, vector<1x8x384xf32>
    %23 = vector.shape_cast %22 : vector<1x8x384xf32> to vector<8x384xf32>
    %c56 = arith.constant 56 : index
    %c0_25 = arith.constant 0 : index
    %24 = vector.load %arg9[%c56, %c0_25] : memref<72x384xf32, #tpu.memory_space<vmem>>, vector<8x384xf32>
    tpu.vector_store %arg9[%c56, %c0_25], %23 {strides = array<i32>} : memref<72x384xf32, #tpu.memory_space<vmem>>, vector<8x384xf32>,
    %c0_26 = arith.constant 0 : index
    %c0_27 = arith.constant 0 : index
    %c147 = arith.constant 147 : index
    %25 = vector.load %arg2[%c0_26, %c0_27, %c147] : memref<1x8x640xf32, #tpu.memory_space<vmem>>, vector<1x8x384xf32>
    %26 = vector.shape_cast %25 : vector<1x8x384xf32> to vector<8x384xf32>
    %c64 = arith.constant 64 : index
    %c0_28 = arith.constant 0 : index
    %27 = vector.load %arg9[%c64, %c0_28] : memref<72x384xf32, #tpu.memory_space<vmem>>, vector<8x384xf32>
    tpu.vector_store %arg9[%c64, %c0_28], %26 {strides = array<i32>} : memref<72x384xf32, #tpu.memory_space<vmem>>, vector<8x384xf32>,
    %c0_29 = arith.constant 0 : index
    %c0_30 = arith.constant 0 : index
    %28 = vector.load %arg3[%c0_29, %c0_30] : memref<8x72xf32, #tpu.memory_space<vmem>>, vector<8x72xf32>
    %c0_31 = arith.constant 0 : index
    %c0_32 = arith.constant 0 : index
    %29 = vector.load %arg9[%c0_31, %c0_32] : memref<72x384xf32, #tpu.memory_space<vmem>>, vector<72x384xf32>
    %cst = arith.constant dense<0.000000e+00> : vector<8x384xf32>
    %30 = tpu.matmul %28, %29, %cst {dimension_numbers = #tpu.dot_dimension_numbers<[1], [0], [0], [1], [0, 0, 1, 1], [], []>} : vector<8x72xf32>, vector<72x384xf32>, vector<8x384xf32> -> vector<8x384xf32>
    %c0_33 = arith.constant 0 : index
    %c0_34 = arith.constant 0 : index
    %31 = vector.load %arg4[%c0_33, %c0_34] : memref<8x1xf32, #tpu.memory_space<vmem>>, vector<8x1xf32>
    %32 = vector.broadcast %31 : vector<8x1xf32> to vector<8x384xf32>
    %33 = arith.addf %30, %32 : vector<8x384xf32>
    %cst_35 = arith.constant 0.000000e+00 : f32
    %34 = vector.broadcast %cst_35 : f32 to vector<8x384xf32>
    %35 = arith.maximumf %33, %34 : vector<8x384xf32>
    %36 = vector.broadcast %0 : vector<1x384xf32> to vector<8x384xf32>
    %37 = arith.mulf %35, %36 : vector<8x384xf32>
    %c0_36 = arith.constant 0 : index
    %c128_37 = arith.constant 128 : index
    %38 = vector.load %arg8[%c0_36, %c128_37] : memref<8x640xf32, #tpu.memory_space<vmem>>, vector<8x384xf32>
    tpu.vector_store %arg8[%c0_36, %c128_37], %37 {strides = array<i32>} : memref<8x640xf32, #tpu.memory_space<vmem>>, vector<8x384xf32>,
    %cst_38 = arith.constant 0.000000e+00 : f32
    %39 = vector.broadcast %cst_38 : f32 to vector<8x128xf32>
    %c0_39 = arith.constant 0 : index
    %c0_40 = arith.constant 0 : index
    %40 = vector.load %arg8[%c0_39, %c0_40] : memref<8x640xf32, #tpu.memory_space<vmem>>, vector<8x128xf32>
    tpu.vector_store %arg8[%c0_39, %c0_40], %39 {strides = array<i32>} : memref<8x640xf32, #tpu.memory_space<vmem>>, vector<8x128xf32>,
    %cst_41 = arith.constant 0.000000e+00 : f32
    %41 = vector.broadcast %cst_41 : f32 to vector<8x128xf32>
    %c0_42 = arith.constant 0 : index
    %c512 = arith.constant 512 : index
    %42 = vector.load %arg8[%c0_42, %c512] : memref<8x640xf32, #tpu.memory_space<vmem>>, vector<8x128xf32>
    tpu.vector_store %arg8[%c0_42, %c512], %41 {strides = array<i32>} : memref<8x640xf32, #tpu.memory_space<vmem>>, vector<8x128xf32>,
    %c0_43 = arith.constant 0 : index
    %c109_44 = arith.constant 109 : index
    %43 = vector.load %arg8[%c0_43, %c109_44] : memref<8x640xf32, #tpu.memory_space<vmem>>, vector<8x384xf32>
    %c0_45 = arith.constant 0 : index
    %c0_46 = arith.constant 0 : index
    %44 = vector.load %arg10[%c0_45, %c0_46] : memref<72x384xf32, #tpu.memory_space<vmem>>, vector<8x384xf32>
    tpu.vector_store %arg10[%c0_45, %c0_46], %43 {strides = array<i32>} : memref<72x384xf32, #tpu.memory_space<vmem>>, vector<8x384xf32>,
    %c0_47 = arith.constant 0 : index
    %c110_48 = arith.constant 110 : index
    %45 = vector.load %arg8[%c0_47, %c110_48] : memref<8x640xf32, #tpu.memory_space<vmem>>, vector<8x384xf32>
    %c8_49 = arith.constant 8 : index
    %c0_50 = arith.constant 0 : index
    %46 = vector.load %arg10[%c8_49, %c0_50] : memref<72x384xf32, #tpu.memory_space<vmem>>, vector<8x384xf32>
    tpu.vector_store %arg10[%c8_49, %c0_50], %45 {strides = array<i32>} : memref<72x384xf32, #tpu.memory_space<vmem>>, vector<8x384xf32>,
    %c0_51 = arith.constant 0 : index
    %c111_52 = arith.constant 111 : index
    %47 = vector.load %arg8[%c0_51, %c111_52] : memref<8x640xf32, #tpu.memory_space<vmem>>, vector<8x384xf32>
    %c16_53 = arith.constant 16 : index
    %c0_54 = arith.constant 0 : index
    %48 = vector.load %arg10[%c16_53, %c0_54] : memref<72x384xf32, #tpu.memory_space<vmem>>, vector<8x384xf32>
    tpu.vector_store %arg10[%c16_53, %c0_54], %47 {strides = array<i32>} : memref<72x384xf32, #tpu.memory_space<vmem>>, vector<8x384xf32>,
    %c0_55 = arith.constant 0 : index
    %c127_56 = arith.constant 127 : index
    %49 = vector.load %arg8[%c0_55, %c127_56] : memref<8x640xf32, #tpu.memory_space<vmem>>, vector<8x384xf32>
    %c24_57 = arith.constant 24 : index
    %c0_58 = arith.constant 0 : index
    %50 = vector.load %arg10[%c24_57, %c0_58] : memref<72x384xf32, #tpu.memory_space<vmem>>, vector<8x384xf32>
    tpu.vector_store %arg10[%c24_57, %c0_58], %49 {strides = array<i32>} : memref<72x384xf32, #tpu.memory_space<vmem>>, vector<8x384xf32>,
    %c0_59 = arith.constant 0 : index
    %c128_60 = arith.constant 128 : index
    %51 = vector.load %arg8[%c0_59, %c128_60] : memref<8x640xf32, #tpu.memory_space<vmem>>, vector<8x384xf32>
    %c32_61 = arith.constant 32 : index
    %c0_62 = arith.constant 0 : index
    %52 = vector.load %arg10[%c32_61, %c0_62] : memref<72x384xf32, #tpu.memory_space<vmem>>, vector<8x384xf32>
    tpu.vector_store %arg10[%c32_61, %c0_62], %51 {strides = array<i32>} : memref<72x384xf32, #tpu.memory_space<vmem>>, vector<8x384xf32>,
    %c0_63 = arith.constant 0 : index
    %c129_64 = arith.constant 129 : index
    %53 = vector.load %arg8[%c0_63, %c129_64] : memref<8x640xf32, #tpu.memory_space<vmem>>, vector<8x384xf32>
    %c40_65 = arith.constant 40 : index
    %c0_66 = arith.constant 0 : index
    %54 = vector.load %arg10[%c40_65, %c0_66] : memref<72x384xf32, #tpu.memory_space<vmem>>, vector<8x384xf32>
    tpu.vector_store %arg10[%c40_65, %c0_66], %53 {strides = array<i32>} : memref<72x384xf32, #tpu.memory_space<vmem>>, vector<8x384xf32>,
    %c0_67 = arith.constant 0 : index
    %c145_68 = arith.constant 145 : index
    %55 = vector.load %arg8[%c0_67, %c145_68] : memref<8x640xf32, #tpu.memory_space<vmem>>, vector<8x384xf32>
    %c48_69 = arith.constant 48 : index
    %c0_70 = arith.constant 0 : index
    %56 = vector.load %arg10[%c48_69, %c0_70] : memref<72x384xf32, #tpu.memory_space<vmem>>, vector<8x384xf32>
    tpu.vector_store %arg10[%c48_69, %c0_70], %55 {strides = array<i32>} : memref<72x384xf32, #tpu.memory_space<vmem>>, vector<8x384xf32>,
    %c0_71 = arith.constant 0 : index
    %c146_72 = arith.constant 146 : index
    %57 = vector.load %arg8[%c0_71, %c146_72] : memref<8x640xf32, #tpu.memory_space<vmem>>, vector<8x384xf32>
    %c56_73 = arith.constant 56 : index
    %c0_74 = arith.constant 0 : index
    %58 = vector.load %arg10[%c56_73, %c0_74] : memref<72x384xf32, #tpu.memory_space<vmem>>, vector<8x384xf32>
    tpu.vector_store %arg10[%c56_73, %c0_74], %57 {strides = array<i32>} : memref<72x384xf32, #tpu.memory_space<vmem>>, vector<8x384xf32>,
    %c0_75 = arith.constant 0 : index
    %c147_76 = arith.constant 147 : index
    %59 = vector.load %arg8[%c0_75, %c147_76] : memref<8x640xf32, #tpu.memory_space<vmem>>, vector<8x384xf32>
    %c64_77 = arith.constant 64 : index
    %c0_78 = arith.constant 0 : index
    %60 = vector.load %arg10[%c64_77, %c0_78] : memref<72x384xf32, #tpu.memory_space<vmem>>, vector<8x384xf32>
    tpu.vector_store %arg10[%c64_77, %c0_78], %59 {strides = array<i32>} : memref<72x384xf32, #tpu.memory_space<vmem>>, vector<8x384xf32>,
    %c0_79 = arith.constant 0 : index
    %c0_80 = arith.constant 0 : index
    %61 = vector.load %arg5[%c0_79, %c0_80] : memref<8x72xf32, #tpu.memory_space<vmem>>, vector<8x72xf32>
    %c0_81 = arith.constant 0 : index
    %c0_82 = arith.constant 0 : index
    %62 = vector.load %arg10[%c0_81, %c0_82] : memref<72x384xf32, #tpu.memory_space<vmem>>, vector<72x384xf32>
    %cst_83 = arith.constant dense<0.000000e+00> : vector<8x384xf32>
    %63 = tpu.matmul %61, %62, %cst_83 {dimension_numbers = #tpu.dot_dimension_numbers<[1], [0], [0], [1], [0, 0, 1, 1], [], []>} : vector<8x72xf32>, vector<72x384xf32>, vector<8x384xf32> -> vector<8x384xf32>
    %c0_84 = arith.constant 0 : index
    %c0_85 = arith.constant 0 : index
    %64 = vector.load %arg6[%c0_84, %c0_85] : memref<8x1xf32, #tpu.memory_space<vmem>>, vector<8x1xf32>
    %65 = vector.broadcast %64 : vector<8x1xf32> to vector<8x384xf32>
    %66 = arith.addf %63, %65 : vector<8x384xf32>
    %cst_86 = arith.constant 0.000000e+00 : f32
    %67 = vector.broadcast %cst_86 : f32 to vector<8x384xf32>
    %68 = arith.maximumf %66, %67 : vector<8x384xf32>
    %c0_87 = arith.constant 0 : index
    %c0_88 = arith.constant 0 : index
    %c0_89 = arith.constant 0 : index
    %69 = vector.load %arg7[%c0_87, %c0_88, %c0_89] : memref<1x8x384xf32, #tpu.memory_space<vmem>>, vector<1x8x384xf32>
    %70 = vector.shape_cast %69 : vector<1x8x384xf32> to vector<8x384xf32>
    %71 = vector.shape_cast %68 : vector<8x384xf32> to vector<1x8x384xf32>
    tpu.vector_store %arg7[%c0_87, %c0_88, %c0_89], %71 {strides = array<i32>} : memref<1x8x384xf32, #tpu.memory_space<vmem>>, vector<1x8x384xf32>,
    return
  }
  func.func @transform_0(%arg0: i32) -> (i32, i32) {
    %c0_i32 = arith.constant 0 : i32
    %c0_i32_0 = arith.constant 0 : i32
    %c0_i32_1 = arith.constant 0 : i32
    return %c0_i32, %c0_i32_0 : i32, i32
  }
  func.func @transform_1(%arg0: i32) -> (i32, i32, i32) {
    %c0_i32 = arith.constant 0 : i32
    %c0_i32_0 = arith.constant 0 : i32
    %c0_i32_1 = arith.constant 0 : i32
    return %arg0, %c0_i32, %c0_i32_0 : i32, i32, i32
  }
  func.func @transform_2(%arg0: i32) -> (i32, i32) {
    %c0_i32 = arith.constant 0 : i32
    %c0_i32_0 = arith.constant 0 : i32
    %c0_i32_1 = arith.constant 0 : i32
    return %c0_i32, %c0_i32_0 : i32, i32
  }
  func.func @transform_3(%arg0: i32) -> (i32, i32) {
    %c0_i32 = arith.constant 0 : i32
    %c0_i32_0 = arith.constant 0 : i32
    %c0_i32_1 = arith.constant 0 : i32
    return %c0_i32, %c0_i32_0 : i32, i32
  }
  func.func @transform_4(%arg0: i32) -> (i32, i32) {
    %c0_i32 = arith.constant 0 : i32
    %c0_i32_0 = arith.constant 0 : i32
    %c0_i32_1 = arith.constant 0 : i32
    return %c0_i32, %c0_i32_0 : i32, i32
  }
  func.func @transform_5(%arg0: i32) -> (i32, i32) {
    %c0_i32 = arith.constant 0 : i32
    %c0_i32_0 = arith.constant 0 : i32
    %c0_i32_1 = arith.constant 0 : i32
    return %c0_i32, %c0_i32_0 : i32, i32
  }
  func.func @transform_6(%arg0: i32) -> (i32, i32, i32) {
    %c0_i32 = arith.constant 0 : i32
    %c0_i32_0 = arith.constant 0 : i32
    %c0_i32_1 = arith.constant 0 : i32
    return %arg0, %c0_i32, %c0_i32_0 : i32, i32, i32
  }
}

</mosaic_0001>

<llo_original>
// kernel: double_conv.1
$region0: #{double_conv.1}
  #allocation0 [shape = 'u32[]', space=smem, size = 0x4, offset = 0x4, fixed_abs, tag = 'smem constant byte address 0x4 - core index']
  #allocation1 [shape = 'u32[144,128]{1,0:T(1,128)}', space=vmem, size = 0x12000, scoped, tag = 'internal scratch']
  #allocation2 [shape = 'f32[8,640]{1,0:T(8,128)}', space=vmem, size = 0x5000, scoped, tag = 'scratch operand']
  #allocation3 [shape = 'f32[72,384]{1,0:T(8,128)}', space=vmem, size = 0x1b000, scoped, tag = 'scratch operand']
  #allocation4 [shape = 'f32[72,384]{1,0:T(8,128)}', space=vmem, size = 0x1b000, scoped, tag = 'scratch operand']
  %s0 = inlined_call_operand.vmem [shape: f32[1,384], index: 0, kind: input, shape index: {}]
  %s1 = inlined_call_operand.vmem [shape: f32[2,8,640], index: 1, kind: input, shape index: {}]
  %s2 = inlined_call_operand.vmem [shape: f32[8,72], index: 2, kind: input, shape index: {}]
  %s3 = inlined_call_operand.vmem [shape: f32[8,1], index: 3, kind: input, shape index: {}]
  %s4 = inlined_call_operand.vmem [shape: f32[8,72], index: 4, kind: input, shape index: {}]
  %s5 = inlined_call_operand.vmem [shape: f32[8,1], index: 5, kind: input, shape index: {}]
  %s6 = inlined_call_operand.vmem [shape: f32[2,8,384], index: 6, kind: output, shape index: {}]
  %s7 = sld [smem:[#allocation0]]
  $region57: #{double_conv.1} parent=0
    _
  %s9 = ssub.s32 1, %s7
  %s10 = scalar_select 0, %s9, %s7
  loop: start=0, step=1, limit=4
  $region2: #{double_conv.1} parent=0 // loop_pre_header
    _
  $region3: #{double_conv.1} parent=0 // loop_header
    %s12 = sphi 0, %s16
    %p13 = scmp.ge.s32.totalorder %s12, 4
    %s20 = sphi 0, %s20
    %s22 = sphi 0, %s20
    %s23 = sphi 0, %s22
    %s37 = sphi 0, %s23
    %s43 = sphi 0, %s45
    %s46 = sphi 0, %s43
    %s47 = sphi 0, %s46
    %s63 = sphi 0, %s47
    %s67 = sphi 0, %s67
    %s69 = sphi 0, %s67
    %s70 = sphi 0, %s69
    %s84 = sphi 0, %s70
    %s88 = sphi 0, %s88
    %s90 = sphi 0, %s88
    %s91 = sphi 0, %s90
    %s105 = sphi 0, %s91
    %s109 = sphi 0, %s109
    %s111 = sphi 0, %s109
    %s112 = sphi 0, %s111
    %s126 = sphi 0, %s112
    %s130 = sphi 0, %s130
    %s132 = sphi 0, %s130
    %s133 = sphi 0, %s132
    %s147 = sphi 0, %s133
    %s153 = sphi 0, %s155
    %s156 = sphi 0, %s153
    %s157 = sphi 0, %s156
    %s173 = sphi 0, %s157
  $region4: #{double_conv.1} parent=0 // loop_header_branch
    %15 = sbr.rel (%p13) target = $region8
  $region5: #{double_conv.1} parent=0 // loop_body
    %s17 = ssub.s32 %s12, 1
    %s18 = ssub.s32 %s12, 2
    %s19 = sadd.s32 %s12, 1
    %s21 = sadd.s32 %s20, 1
    %p24 = scmp.eq.s32.totalorder %s12, 1
    %p25 = scmp.ne.s32.totalorder %s20, %s22
    %p26 = scmp.eq.s32.totalorder %s12, 0
    %p27 = por %p25, %p26
    %p28 = scmp.ne.s32.totalorder %s20, %s22
    %p29 = scmp.eq.s32.totalorder %s17, 1
    %p30 = por %p28, %p29
    %p31 = scmp.ne.s32.totalorder %s22, %s23
    %p32 = scmp.eq.s32.totalorder %s17, 0
    %p33 = por %p31, %p32
    %p34 = scmp.ne.s32.totalorder %s22, %s23
    %p35 = scmp.eq.s32.totalorder %s18, 1
    %p36 = por %p34, %p35
    %p38 = scmp.ne.s32.totalorder %s23, %s37
    %p39 = scmp.eq.s32.totalorder %s18, 0
    %p40 = por %p38, %p39
    %s41 = ssub.s32 %s12, %s19
    %p42 = scmp.eq.s32.totalorder %s41, 0
    %s44 = sadd.s32 %s43, 1
    %s45 = scalar_select %p42, %s43, %s44
    %p48 = pneg %p42
    %p49 = scmp.eq.s32.totalorder %s12, 1
    %p50 = por %p48, %p49
    %p51 = scmp.ne.s32.totalorder %s43, %s46
    %p52 = scmp.eq.s32.totalorder %s12, 0
    %p53 = por %p51, %p52
    %p54 = scmp.ne.s32.totalorder %s43, %s46
    %p55 = scmp.eq.s32.totalorder %s17, 1
    %p56 = por %p54, %p55
    %p57 = scmp.ne.s32.totalorder %s46, %s47
    %p58 = scmp.eq.s32.totalorder %s17, 0
    %p59 = por %p57, %p58
    %p60 = scmp.ne.s32.totalorder %s46, %s47
    %p61 = scmp.eq.s32.totalorder %s18, 1
    %p62 = por %p60, %p61
    %p64 = scmp.ne.s32.totalorder %s47, %s63
    %p65 = scmp.eq.s32.totalorder %s18, 0
    %p66 = por %p64, %p65
    %s68 = sadd.s32 %s67, 1
    %p71 = scmp.eq.s32.totalorder %s12, 1
    %p72 = scmp.ne.s32.totalorder %s67, %s69
    %p73 = scmp.eq.s32.totalorder %s12, 0
    %p74 = por %p72, %p73
    %p75 = scmp.ne.s32.totalorder %s67, %s69
    %p76 = scmp.eq.s32.totalorder %s17, 1
    %p77 = por %p75, %p76
    %p78 = scmp.ne.s32.totalorder %s69, %s70
    %p79 = scmp.eq.s32.totalorder %s17, 0
    %p80 = por %p78, %p79
    %p81 = scmp.ne.s32.totalorder %s69, %s70
    %p82 = scmp.eq.s32.totalorder %s18, 1
    %p83 = por %p81, %p82
    %p85 = scmp.ne.s32.totalorder %s70, %s84
    %p86 = scmp.eq.s32.totalorder %s18, 0
    %p87 = por %p85, %p86
    %s89 = sadd.s32 %s88, 1
    %p92 = scmp.eq.s32.totalorder %s12, 1
    %p93 = scmp.ne.s32.totalorder %s88, %s90
    %p94 = scmp.eq.s32.totalorder %s12, 0
    %p95 = por %p93, %p94
    %p96 = scmp.ne.s32.totalorder %s88, %s90
    %p97 = scmp.eq.s32.totalorder %s17, 1
    %p98 = por %p96, %p97
    %p99 = scmp.ne.s32.totalorder %s90, %s91
    %p100 = scmp.eq.s32.totalorder %s17, 0
    %p101 = por %p99, %p100
    %p102 = scmp.ne.s32.totalorder %s90, %s91
    %p103 = scmp.eq.s32.totalorder %s18, 1
    %p104 = por %p102, %p103
    %p106 = scmp.ne.s32.totalorder %s91, %s105
    %p107 = scmp.eq.s32.totalorder %s18, 0
    %p108 = por %p106, %p107
    %s110 = sadd.s32 %s109, 1
    %p113 = scmp.eq.s32.totalorder %s12, 1
    %p114 = scmp.ne.s32.totalorder %s109, %s111
    %p115 = scmp.eq.s32.totalorder %s12, 0
    %p116 = por %p114, %p115
    %p117 = scmp.ne.s32.totalorder %s109, %s111
    %p118 = scmp.eq.s32.totalorder %s17, 1
    %p119 = por %p117, %p118
    %p120 = scmp.ne.s32.totalorder %s111, %s112
    %p121 = scmp.eq.s32.totalorder %s17, 0
    %p122 = por %p120, %p121
    %p123 = scmp.ne.s32.totalorder %s111, %s112
    %p124 = scmp.eq.s32.totalorder %s18, 1
    %p125 = por %p123, %p124
    %p127 = scmp.ne.s32.totalorder %s112, %s126
    %p128 = scmp.eq.s32.totalorder %s18, 0
    %p129 = por %p127, %p128
    %s131 = sadd.s32 %s130, 1
    %p134 = scmp.eq.s32.totalorder %s12, 1
    %p135 = scmp.ne.s32.totalorder %s130, %s132
    %p136 = scmp.eq.s32.totalorder %s12, 0
    %p137 = por %p135, %p136
    %p138 = scmp.ne.s32.totalorder %s130, %s132
    %p139 = scmp.eq.s32.totalorder %s17, 1
    %p140 = por %p138, %p139
    %p141 = scmp.ne.s32.totalorder %s132, %s133
    %p142 = scmp.eq.s32.totalorder %s17, 0
    %p143 = por %p141, %p142
    %p144 = scmp.ne.s32.totalorder %s132, %s133
    %p145 = scmp.eq.s32.totalorder %s18, 1
    %p146 = por %p144, %p145
    %p148 = scmp.ne.s32.totalorder %s133, %s147
    %p149 = scmp.eq.s32.totalorder %s18, 0
    %p150 = por %p148, %p149
    %s151 = ssub.s32 %s12, %s19
    %p152 = scmp.eq.s32.totalorder %s151, 0
    %s154 = sadd.s32 %s153, 1
    %s155 = scalar_select %p152, %s153, %s154
    %p158 = pneg %p152
    %p159 = scmp.eq.s32.totalorder %s12, 1
    %p160 = por %p158, %p159
    %p161 = scmp.ne.s32.totalorder %s153, %s156
    %p162 = scmp.eq.s32.totalorder %s12, 0
    %p163 = por %p161, %p162
    %p164 = scmp.ne.s32.totalorder %s153, %s156
    %p165 = scmp.eq.s32.totalorder %s17, 1
    %p166 = por %p164, %p165
    %p167 = scmp.ne.s32.totalorder %s156, %s157
    %p168 = scmp.eq.s32.totalorder %s17, 0
    %p169 = por %p167, %p168
    %p170 = scmp.ne.s32.totalorder %s156, %s157
    %p171 = scmp.eq.s32.totalorder %s18, 1
    %p172 = por %p170, %p171
    %p174 = scmp.ne.s32.totalorder %s157, %s173
    %p175 = scmp.eq.s32.totalorder %s18, 0
    %p176 = por %p174, %p175
    %p177 = scmp.le.s32.totalorder 1, %s12
    %p178 = scmp.lt.s32.totalorder %s12, 3
    %p179 = pnand %p177, %p178
    %p180 = pneg %p179
    // Predicated region
    $region9: #{double_conv.1} parent=5 // pred_check
      _
    $region10: #{double_conv.1} parent=5 // pred_check_branch
      %182 = sbr.rel (%p179) target = $region12
    $region11: #{double_conv.1} parent=5 // pred_region
      %s183 = ssub.s32 %s12, 1
      // Predicated region
      $region13: #{double_conv.1} parent=11 // pred_check
        %p184 = pneg %p33
      $region14: #{double_conv.1} parent=11 // pred_check_branch
        %186 = sbr.rel (%p184) target = $region16
      $region15: #{double_conv.1} parent=11 // pred_region
        _
      $region16: #{double_conv.1} parent=11 // pred_fallthru
        _
      // Predicated region
      $region17: #{double_conv.1} parent=11 // pred_check
        %p187 = pneg %p80
      $region18: #{double_conv.1} parent=11 // pred_check_branch
        %189 = sbr.rel (%p187) target = $region20
      $region19: #{double_conv.1} parent=11 // pred_region
        _
      $region20: #{double_conv.1} parent=11 // pred_fallthru
        _
      // Predicated region
      $region21: #{double_conv.1} parent=11 // pred_check
        %p190 = pneg %p101
      $region22: #{double_conv.1} parent=11 // pred_check_branch
        %192 = sbr.rel (%p190) target = $region24
      $region23: #{double_conv.1} parent=11 // pred_region
        _
      $region24: #{double_conv.1} parent=11 // pred_fallthru
        _
      // Predicated region
      $region25: #{double_conv.1} parent=11 // pred_check
        %p193 = pneg %p122
      $region26: #{double_conv.1} parent=11 // pred_check_branch
        %195 = sbr.rel (%p193) target = $region28
      $region27: #{double_conv.1} parent=11 // pred_region
        _
      $region28: #{double_conv.1} parent=11 // pred_fallthru
        _
      // Predicated region
      $region29: #{double_conv.1} parent=11 // pred_check
        %p196 = pneg %p143
      $region30: #{double_conv.1} parent=11 // pred_check_branch
        %198 = sbr.rel (%p196) target = $region32
      $region31: #{double_conv.1} parent=11 // pred_region
        _
      $region32: #{double_conv.1} parent=11 // pred_fallthru
        _
    $region12: #{double_conv.1} parent=5 // pred_fallthru
      _
    %p199 = scmp.lt.s32.totalorder %s12, 2
    // Predicated region
    $region33: #{double_conv.1} parent=5 // pred_check
      %p200 = pneg %p199
    $region34: #{double_conv.1} parent=5 // pred_check_branch
      %202 = sbr.rel (%p200) target = $region36
    $region35: #{double_conv.1} parent=5 // pred_region
      // Predicated region
      $region37: #{double_conv.1} parent=35 // pred_check
        %p203 = pneg %p53
      $region38: #{double_conv.1} parent=35 // pred_check_branch
        %205 = sbr.rel (%p203) target = $region40
      $region39: #{double_conv.1} parent=35 // pred_region
        %p206 = scmp.lt.s32.totalorder %s12, 1
        %s207 = scalar_select %p206, %s12, 1
        %s208 = smul.addr %s207, 5
        %s209 = smul.addr %s208, 8
        %s210 = scalar_lea.vmem %s1, %s209
      $region40: #{double_conv.1} parent=35 // pred_fallthru
        _
    $region36: #{double_conv.1} parent=5 // pred_fallthru
      _
    %p211 = scmp.le.s32.totalorder 1, %s12
    %p212 = scmp.lt.s32.totalorder %s12, 3
    %p213 = pnand %p211, %p212
    %p214 = pneg %p213
    // Predicated region
    $region41: #{double_conv.1} parent=5 // pred_check
      _
    $region42: #{double_conv.1} parent=5 // pred_check_branch
      %216 = sbr.rel (%p213) target = $region44
    $region43: #{double_conv.1} parent=5 // pred_region
      %s217 = ssub.s32 %s12, 1
      %p218 = pneg %p33
      %p219 = pneg %p30
      %p220 = scmp.lt.s32.totalorder %s17, 1
      %s221 = scalar_select %p220, %s17, 1
      %s222 = smul.addr %s221, 5
      %s223 = smul.addr %s222, 8
      %s224 = scalar_lea.vmem %s1, %s223
      %p225 = pneg %p59
      %p226 = pneg %p56
      %p227 = pneg %p80
      %p228 = pneg %p77
      %p229 = pneg %p101
      %p230 = pneg %p98
      %p231 = pneg %p122
      %p232 = pneg %p119
      %p233 = pneg %p143
      %p234 = pneg %p140
      %p235 = pneg %p169
      %p236 = pneg %p166
      %p237 = scmp.lt.s32.totalorder %s17, 1
      %s238 = scalar_select %p237, %s17, 1
      %s239 = smul.addr %s238, 3
      %s240 = smul.addr %s239, 8
      %s241 = scalar_lea.vmem %s6, %s240
      %p242 = scmp.lt.s32.totalorder %s17, 1
      %s243 = scalar_select %p242, %s17, 1
      %s244 = smul.addr %s243, 5
      %s245 = smul.addr %s244, 8
      %s246 = scalar_lea.vmem %s1, %s245
      %p247 = scmp.lt.s32.totalorder %s17, 1
      %s248 = scalar_select %p247, %s17, 1
      %s249 = smul.addr %s248, 3
      %s250 = smul.addr %s249, 8
      %s251 = scalar_lea.vmem %s6, %s250
      %v252 = vld [vmem:[%s0] sm:$0x7]
      %v253 = vld [vmem:[%s246] sm:$0xff]
      %v254 = vld [vmem:[%s246 + $0x8] sm:$0xff]
      %v255 = vld [vmem:[%s246 + $0x10] sm:$0xff]
      %v256 = vld [vmem:[%s246 + $0x18] sm:$0xff]
      %261 = vrot.lane.b32.xlu0 %v253, 19
      %v262 = vpop.permute.xlu0 %261
      %263 = vrot.lane.b32.xlu0 %v254, 19
      %v264 = vpop.permute.xlu0 %263
      %265 = vrot.lane.b32.xlu0 %v255, 19
      %v266 = vpop.permute.xlu0 %265
      %267 = vrot.lane.b32.xlu0 %v256, 19
      %v268 = vpop.permute.xlu0 %267
      %vm269 = vcmask 154624
      %v270 = vsel %vm269, %v262, %v264
      %v271 = vsel %vm269, %v264, %v266
      %v272 = vsel %vm269, %v266, %v268
      %276 = vst [vmem:[#allocation3] sm:$0xff] %v270
      %277 = vst [vmem:[#allocation3 + $0x8] sm:$0xff] %v271
      %278 = vst [vmem:[#allocation3 + $0x10] sm:$0xff] %v272
      %v279 = vld [vmem:[%s246] sm:$0xff]
      %v280 = vld [vmem:[%s246 + $0x8] sm:$0xff]
      %v281 = vld [vmem:[%s246 + $0x10] sm:$0xff]
      %v282 = vld [vmem:[%s246 + $0x18] sm:$0xff]
      %287 = vrot.lane.b32.xlu0 %v279, 18
      %v288 = vpop.permute.xlu0 %287
      %289 = vrot.lane.b32.xlu0 %v280, 18
      %v290 = vpop.permute.xlu0 %289
      %291 = vrot.lane.b32.xlu0 %v281, 18
      %v292 = vpop.permute.xlu0 %291
      %293 = vrot.lane.b32.xlu0 %v282, 18
      %v294 = vpop.permute.xlu0 %293
      %vm295 = vcmask 146432
      %v296 = vsel %vm295, %v288, %v290
      %v297 = vsel %vm295, %v290, %v292
      %v298 = vsel %vm295, %v292, %v294
      %302 = vst [vmem:[#allocation3 + $0x18] sm:$0xff] %v296
      %303 = vst [vmem:[#allocation3 + $0x20] sm:$0xff] %v297
      %304 = vst [vmem:[#allocation3 + $0x28] sm:$0xff] %v298
      %v305 = vld [vmem:[%s246] sm:$0xff]
      %v306 = vld [vmem:[%s246 + $0x8] sm:$0xff]
      %v307 = vld [vmem:[%s246 + $0x10] sm:$0xff]
      %v308 = vld [vmem:[%s246 + $0x18] sm:$0xff]
      %313 = vrot.lane.b32.xlu0 %v305, 17
      %v314 = vpop.permute.xlu0 %313
      %315 = vrot.lane.b32.xlu0 %v306, 17
      %v316 = vpop.permute.xlu0 %315
      %317 = vrot.lane.b32.xlu0 %v307, 17
      %v318 = vpop.permute.xlu0 %317
      %319 = vrot.lane.b32.xlu0 %v308, 17
      %v320 = vpop.permute.xlu0 %319
      %vm321 = vcmask 138240
      %v322 = vsel %vm321, %v314, %v316
      %v323 = vsel %vm321, %v316, %v318
      %v324 = vsel %vm321, %v318, %v320
      %328 = vst [vmem:[#allocation3 + $0x30] sm:$0xff] %v322
      %329 = vst [vmem:[#allocation3 + $0x38] sm:$0xff] %v323
      %330 = vst [vmem:[#allocation3 + $0x40] sm:$0xff] %v324
      %v331 = vld [vmem:[%s246] sm:$0xff]
      %v332 = vld [vmem:[%s246 + $0x8] sm:$0xff]
      %v333 = vld [vmem:[%s246 + $0x10] sm:$0xff]
      %v334 = vld [vmem:[%s246 + $0x18] sm:$0xff]
      %339 = vrot.lane.b32.xlu0 %v331, 1
      %v340 = vpop.permute.xlu0 %339
      %341 = vrot.lane.b32.xlu0 %v332, 1
      %v342 = vpop.permute.xlu0 %341
      %343 = vrot.lane.b32.xlu0 %v333, 1
      %v344 = vpop.permute.xlu0 %343
      %345 = vrot.lane.b32.xlu0 %v334, 1
      %v346 = vpop.permute.xlu0 %345
      %vm347 = vcmask 7168
      %v348 = vsel %vm347, %v340, %v342
      %v349 = vsel %vm347, %v342, %v344
      %v350 = vsel %vm347, %v344, %v346
      %354 = vst [vmem:[#allocation3 + $0x48] sm:$0xff] %v348
      %355 = vst [vmem:[#allocation3 + $0x50] sm:$0xff] %v349
      %356 = vst [vmem:[#allocation3 + $0x58] sm:$0xff] %v350
      %v357 = vld [vmem:[%s246 + $0x8] sm:$0xff]
      %v358 = vld [vmem:[%s246 + $0x10] sm:$0xff]
      %v359 = vld [vmem:[%s246 + $0x18] sm:$0xff]
      %360 = vst [vmem:[#allocation3 + $0x60] sm:$0xff] %v357
      %361 = vst [vmem:[#allocation3 + $0x68] sm:$0xff] %v358
      %362 = vst [vmem:[#allocation3 + $0x70] sm:$0xff] %v359
      %v363 = vld [vmem:[%s246 + $0x8] sm:$0xff]
      %v364 = vld [vmem:[%s246 + $0x10] sm:$0xff]
      %v365 = vld [vmem:[%s246 + $0x18] sm:$0xff]
      %v366 = vld [vmem:[%s246 + $0x20] sm:$0xff]
      %371 = vrot.lane.b32.xlu0 %v363, 127
      %v372 = vpop.permute.xlu0 %371
      %373 = vrot.lane.b32.xlu0 %v364, 127
      %v374 = vpop.permute.xlu0 %373
      %375 = vrot.lane.b32.xlu0 %v365, 127
      %v376 = vpop.permute.xlu0 %375
      %377 = vrot.lane.b32.xlu0 %v366, 127
      %v378 = vpop.permute.xlu0 %377
      %vm379 = vcmask 1039360
      %v380 = vsel %vm379, %v372, %v374
      %v381 = vsel %vm379, %v374, %v376
      %v382 = vsel %vm379, %v376, %v378
      %386 = vst [vmem:[#allocation3 + $0x78] sm:$0xff] %v380
      %387 = vst [vmem:[#allocation3 + $0x80] sm:$0xff] %v381
      %388 = vst [vmem:[#allocation3 + $0x88] sm:$0xff] %v382
      %v389 = vld [vmem:[%s246 + $0x8] sm:$0xff]
      %v390 = vld [vmem:[%s246 + $0x10] sm:$0xff]
      %v391 = vld [vmem:[%s246 + $0x18] sm:$0xff]
      %v392 = vld [vmem:[%s246 + $0x20] sm:$0xff]
      %397 = vrot.lane.b32.xlu0 %v389, 111
      %v398 = vpop.permute.xlu0 %397
      %399 = vrot.lane.b32.xlu0 %v390, 111
      %v400 = vpop.permute.xlu0 %399
      %401 = vrot.lane.b32.xlu0 %v391, 111
      %v402 = vpop.permute.xlu0 %401
      %403 = vrot.lane.b32.xlu0 %v392, 111
      %v404 = vpop.permute.xlu0 %403
      %vm405 = vcmask 908288
      %v406 = vsel %vm405, %v398, %v400
      %v407 = vsel %vm405, %v400, %v402
      %v408 = vsel %vm405, %v402, %v404
      %412 = vst [vmem:[#allocation3 + $0x90] sm:$0xff] %v406
      %413 = vst [vmem:[#allocation3 + $0x98] sm:$0xff] %v407
      %414 = vst [vmem:[#allocation3 + $0xa0] sm:$0xff] %v408
      %v415 = vld [vmem:[%s246 + $0x8] sm:$0xff]
      %v416 = vld [vmem:[%s246 + $0x10] sm:$0xff]
      %v417 = vld [vmem:[%s246 + $0x18] sm:$0xff]
      %v418 = vld [vmem:[%s246 + $0x20] sm:$0xff]
      %423 = vrot.lane.b32.xlu0 %v415, 110
      %v424 = vpop.permute.xlu0 %423
      %425 = vrot.lane.b32.xlu0 %v416, 110
      %v426 = vpop.permute.xlu0 %425
      %427 = vrot.lane.b32.xlu0 %v417, 110
      %v428 = vpop.permute.xlu0 %427
      %429 = vrot.lane.b32.xlu0 %v418, 110
      %v430 = vpop.permute.xlu0 %429
      %vm431 = vcmask 900096
      %v432 = vsel %vm431, %v424, %v426
      %v433 = vsel %vm431, %v426, %v428
      %v434 = vsel %vm431, %v428, %v430
      %438 = vst [vmem:[#allocation3 + $0xa8] sm:$0xff] %v432
      %439 = vst [vmem:[#allocation3 + $0xb0] sm:$0xff] %v433
      %440 = vst [vmem:[#allocation3 + $0xb8] sm:$0xff] %v434
      %v441 = vld [vmem:[%s246 + $0x8] sm:$0xff]
      %v442 = vld [vmem:[%s246 + $0x10] sm:$0xff]
      %v443 = vld [vmem:[%s246 + $0x18] sm:$0xff]
      %v444 = vld [vmem:[%s246 + $0x20] sm:$0xff]
      %449 = vrot.lane.b32.xlu0 %v441, 109
      %v450 = vpop.permute.xlu0 %449
      %451 = vrot.lane.b32.xlu0 %v442, 109
      %v452 = vpop.permute.xlu0 %451
      %453 = vrot.lane.b32.xlu0 %v443, 109
      %v454 = vpop.permute.xlu0 %453
      %455 = vrot.lane.b32.xlu0 %v444, 109
      %v456 = vpop.permute.xlu0 %455
      %vm457 = vcmask 891904
      %v458 = vsel %vm457, %v450, %v452
      %v459 = vsel %vm457, %v452, %v454
      %v460 = vsel %vm457, %v454, %v456
      %464 = vst [vmem:[#allocation3 + $0xc0] sm:$0xff] %v458
      %465 = vst [vmem:[#allocation3 + $0xc8] sm:$0xff] %v459
      %466 = vst [vmem:[#allocation3 + $0xd0] sm:$0xff] %v460
      %v467 = vld [vmem:[%s2] sm:$0xff]
      %v468 = vld [vmem:[#allocation3] sm:$0xff]
      %v469 = vld [vmem:[#allocation3 + $0x8] sm:$0xff]
      %v470 = vld [vmem:[#allocation3 + $0x10] sm:$0xff]
      %v471 = vld [vmem:[#allocation3 + $0x18] sm:$0xff]
      %v472 = vld [vmem:[#allocation3 + $0x20] sm:$0xff]
      %v473 = vld [vmem:[#allocation3 + $0x28] sm:$0xff]
      %v474 = vld [vmem:[#allocation3 + $0x30] sm:$0xff]
      %v475 = vld [vmem:[#allocation3 + $0x38] sm:$0xff]
      %v476 = vld [vmem:[#allocation3 + $0x40] sm:$0xff]
      %v477 = vld [vmem:[#allocation3 + $0x48] sm:$0xff]
      %v478 = vld [vmem:[#allocation3 + $0x50] sm:$0xff]
      %v479 = vld [vmem:[#allocation3 + $0x58] sm:$0xff]
      %v480 = vld [vmem:[#allocation3 + $0x60] sm:$0xff]
      %v481 = vld [vmem:[#allocation3 + $0x68] sm:$0xff]
      %v482 = vld [vmem:[#allocation3 + $0x70] sm:$0xff]
      %v483 = vld [vmem:[#allocation3 + $0x78] sm:$0xff]
      %v484 = vld [vmem:[#allocation3 + $0x80] sm:$0xff]
      %v485 = vld [vmem:[#allocation3 + $0x88] sm:$0xff]
      %v486 = vld [vmem:[#allocation3 + $0x90] sm:$0xff]
      %v487 = vld [vmem:[#allocation3 + $0x98] sm:$0xff]
      %v488 = vld [vmem:[#allocation3 + $0xa0] sm:$0xff]
      %v489 = vld [vmem:[#allocation3 + $0xa8] sm:$0xff]
      %v490 = vld [vmem:[#allocation3 + $0xb0] sm:$0xff]
      %v491 = vld [vmem:[#allocation3 + $0xb8] sm:$0xff]
      %v492 = vld [vmem:[#allocation3 + $0xc0] sm:$0xff]
      %v493 = vld [vmem:[#allocation3 + $0xc8] sm:$0xff]
      %v494 = vld [vmem:[#allocation3 + $0xd0] sm:$0xff]
      %v495 = vld [vmem:[%s3] sm:$0xff]
      %497 = vset.pattern.permute.xlu0 0
      %498 = vperm.xlu0 %497, %v495
      %v499 = vpop.permute.xlu0 %498
      %vm501 = vcmask 588800
      %v503 = vsel %vm501, %v467, 0
      %505 = vmatprep.subr.mxu0 %v469
      %506 = vmatpush1.msra.mxu0 %v468
      %507 = vmatprep.subr.mxu0 %v472
      %508 = vmatpush1.msra.mxu0 %v471
      %509 = vmatprep.subr.mxu0 %v475
      %510 = vmatpush1.msra.mxu0 %v474
      %511 = vmatprep.subr.mxu0 %v478
      %512 = vmatpush1.msra.mxu0 %v477
      %513 = vmatprep.subr.mxu0 %v481
      %514 = vmatpush1.msra.mxu0 %v480
      %515 = vmatprep.subr.mxu0 %v484
      %516 = vmatpush1.msra.mxu0 %v483
      %517 = vmatprep.subr.mxu0 %v487
      %518 = vmatpush1.msra.mxu0 %v486
      %519 = vmatprep.subr.mxu0 %v490
      %520 = vmatpush1.msra.mxu0 %v489
      %521 = vmatprep.subr.mxu0 %v493
      %522 = vmatpush1.msra.mxu0 %v492
      %523 = vmatprep.subr.mxu0 0.0
      %524 = vmatpush1.msra.mxu0 0.0
      %525 = vmatprep.subr.mxu0 0.0
      %526 = vmatpush1.msra.mxu0 0.0
      %527 = vmatprep.subr.mxu0 0.0
      %528 = vmatpush1.msra.mxu0 0.0
      %529 = vmatprep.subr.mxu0 0.0
      %530 = vmatpush1.msra.mxu0 0.0
      %531 = vmatprep.subr.mxu0 0.0
      %532 = vmatpush1.msra.mxu0 0.0
      %533 = vmatprep.subr.mxu0 0.0
      %534 = vmatpush1.msra.mxu0 0.0
      %535 = vmatprep.subr.mxu0 0.0
      %536 = vmatpush1.msra.mxu0 0.0
      %537 = vmatprep.subr.mxu0 0.0
      %538 = vmatpush1.msra.mxu0 0.0
      %539 = vmatprep.subr.mxu0 0.0
      %540 = vmatpush1.msra.mxu0 0.0
      %541 = vmatprep.subr.mxu0 0.0
      %542 = vmatpush1.msra.mxu0 0.0
      %543 = vmatprep.subr.mxu0 0.0
      %544 = vmatpush1.msra.mxu0 0.0
      %545 = vmatprep.subr.mxu0 0.0
      %546 = vmatpush1.msra.mxu0 0.0
      %547 = vmatprep.subr.mxu0 0.0
      %548 = vmatpush1.msra.mxu0 0.0
      %549 = vmatprep.subr.mxu0 0.0
      %550 = vmatpush1.msra.mxu0 0.0
      %551 = vmatprep.subr.mxu0 0.0
      %552 = vmatpush1.msra.mxu0 0.0
      %553 = vmatprep.subr.mxu0 0.0
      %554 = vmatpush1.msra.mxu0 0.0
      %555 = vmatprep.subr.mxu0 0.0
      %556 = vmatpush1.msra.mxu0 0.0
      %557 = vmatprep.subr.mxu0 0.0
      %558 = vmatpush1.msra.mxu0 0.0
      %559 = vmatprep.subr.mxu0 0.0
      %560 = vmatpush1.msra.mxu0 0.0
      %561 = vmatprep.subr.mxu0 0.0
      %562 = vmatpush1.msra.mxu0 0.0
      %563 = vmatprep.subr.mxu0 0.0
      %564 = vmatpush1.msra.mxu0 0.0
      %565 = vmatprep.subr.mxu0 0.0
      %566 = vmatpush1.msra.mxu0 0.0
      %567 = vmatprep.subr.mxu0 0.0
      %568 = vmatpush1.msra.mxu0 0.0
      %569 = vmatprep.mubr.f32.mxu0 0.0
      %570 = vmatmul.mubr.f32.gmra.mrb[0].mxu0 %v503
      %v571 = vpop.f32.mrb[0].mxu0
      %v572 = vadd.f32 %v499, %v571
      %v573 = vpop.f32.mrb[0].mxu0
      %v574 = vadd.f32 %v499, %v573
      %575 = vdwg.mxu0
      %576 = vmatprep.subr.mxu0 0.0
      %577 = vmatpush1.msra.mxu0 %v470
      %578 = vmatprep.subr.mxu0 0.0
      %579 = vmatpush1.msra.mxu0 %v473
      %580 = vmatprep.subr.mxu0 0.0
      %581 = vmatpush1.msra.mxu0 %v476
      %582 = vmatprep.subr.mxu0 0.0
      %583 = vmatpush1.msra.mxu0 %v479
      %584 = vmatprep.subr.mxu0 0.0
      %585 = vmatpush1.msra.mxu0 %v482
      %586 = vmatprep.subr.mxu0 0.0
      %587 = vmatpush1.msra.mxu0 %v485
      %588 = vmatprep.subr.mxu0 0.0
      %589 = vmatpush1.msra.mxu0 %v488
      %590 = vmatprep.subr.mxu0 0.0
      %591 = vmatpush1.msra.mxu0 %v491
      %592 = vmatprep.subr.mxu0 0.0
      %593 = vmatpush1.msra.mxu0 %v494
      %594 = vmatprep.subr.mxu0 0.0
      %595 = vmatpush1.msra.mxu0 0.0
      %596 = vmatprep.subr.mxu0 0.0
      %597 = vmatpush1.msra.mxu0 0.0
      %598 = vmatprep.subr.mxu0 0.0
      %599 = vmatpush1.msra.mxu0 0.0
      %600 = vmatprep.subr.mxu0 0.0
      %601 = vmatpush1.msra.mxu0 0.0
      %602 = vmatprep.subr.mxu0 0.0
      %603 = vmatpush1.msra.mxu0 0.0
      %604 = vmatprep.subr.mxu0 0.0
      %605 = vmatpush1.msra.mxu0 0.0
      %606 = vmatprep.subr.mxu0 0.0
      %607 = vmatpush1.msra.mxu0 0.0
      %608 = vmatprep.subr.mxu0 0.0
      %609 = vmatpush1.msra.mxu0 0.0
      %610 = vmatprep.subr.mxu0 0.0
      %611 = vmatpush1.msra.mxu0 0.0
      %612 = vmatprep.subr.mxu0 0.0
      %613 = vmatpush1.msra.mxu0 0.0
      %614 = vmatprep.subr.mxu0 0.0
      %615 = vmatpush1.msra.mxu0 0.0
      %616 = vmatprep.subr.mxu0 0.0
      %617 = vmatpush1.msra.mxu0 0.0
      %618 = vmatprep.subr.mxu0 0.0
      %619 = vmatpush1.msra.mxu0 0.0
      %620 = vmatprep.subr.mxu0 0.0
      %621 = vmatpush1.msra.mxu0 0.0
      %622 = vmatprep.subr.mxu0 0.0
      %623 = vmatpush1.msra.mxu0 0.0
      %624 = vmatprep.subr.mxu0 0.0
      %625 = vmatpush1.msra.mxu0 0.0
      %626 = vmatprep.subr.mxu0 0.0
      %627 = vmatpush1.msra.mxu0 0.0
      %628 = vmatprep.subr.mxu0 0.0
      %629 = vmatpush1.msra.mxu0 0.0
      %630 = vmatprep.subr.mxu0 0.0
      %631 = vmatpush1.msra.mxu0 0.0
      %632 = vmatprep.subr.mxu0 0.0
      %633 = vmatpush1.msra.mxu0 0.0
      %634 = vmatprep.subr.mxu0 0.0
      %635 = vmatpush1.msra.mxu0 0.0
      %636 = vmatprep.subr.mxu0 0.0
      %637 = vmatpush1.msra.mxu0 0.0
      %638 = vmatprep.subr.mxu0 0.0
      %639 = vmatpush1.msra.mxu0 0.0
      %640 = vmatprep.mubr.f32.mxu0 0.0
      %641 = vmatmul.mubr.f32.gmra.mrb[0].mxu0 %v503
      %v642 = vpop.f32.mrb[0].mxu0
      %v643 = vadd.f32 %v499, %v642
      %v644 = vpop.f32.mrb[0].mxu0
      %645 = vdwg.mxu0
      %v646 = vmax.f32 %v572, 0.0
      %v647 = vmax.f32 %v574, 0.0
      %v648 = vmax.f32 %v643, 0.0
      %v650 = vlaneseq
      %v651 = vshrl.u32 %v650, 7
      %v652 = vsub.s32 0, %v651
      %v653 = vrot.slane %v252, %v652
      %v654 = vlaneseq
      %v655 = vshrl.u32 %v654, 7
      %v656 = vsub.s32 1, %v655
      %v657 = vrot.slane %v252, %v656
      %v658 = vlaneseq
      %v659 = vshrl.u32 %v658, 7
      %v660 = vsub.s32 2, %v659
      %v661 = vrot.slane %v252, %v660
      %v665 = vmul.f32 %v646, %v653
      %v666 = vmul.f32 %v647, %v657
      %v667 = vmul.f32 %v648, %v661
      %668 = vst [vmem:[#allocation2 + $0x8] sm:$0xff] %v665
      %669 = vst [vmem:[#allocation2 + $0x10] sm:$0xff] %v666
      %670 = vst [vmem:[#allocation2 + $0x18] sm:$0xff] %v667
      %671 = vst [vmem:[#allocation2] sm:$0xff] 0.0
      %672 = vst [vmem:[#allocation2 + $0x20] sm:$0xff] 0.0
      %v673 = vld [vmem:[#allocation2] sm:$0xff]
      %v674 = vld [vmem:[#allocation2 + $0x8] sm:$0xff]
      %v675 = vld [vmem:[#allocation2 + $0x10] sm:$0xff]
      %v676 = vld [vmem:[#allocation2 + $0x18] sm:$0xff]
      %681 = vrot.lane.b32.xlu0 %v673, 19
      %v682 = vpop.permute.xlu0 %681
      %683 = vrot.lane.b32.xlu0 %v674, 19
      %v684 = vpop.permute.xlu0 %683
      %685 = vrot.lane.b32.xlu0 %v675, 19
      %v686 = vpop.permute.xlu0 %685
      %687 = vrot.lane.b32.xlu0 %v676, 19
      %v688 = vpop.permute.xlu0 %687
      %v689 = vsel %vm269, %v682, %v684
      %v690 = vsel %vm269, %v684, %v686
      %v691 = vsel %vm269, %v686, %v688
      %695 = vst [vmem:[#allocation4] sm:$0xff] %v689
      %696 = vst [vmem:[#allocation4 + $0x8] sm:$0xff] %v690
      %697 = vst [vmem:[#allocation4 + $0x10] sm:$0xff] %v691
      %v698 = vld [vmem:[#allocation2] sm:$0xff]
      %v699 = vld [vmem:[#allocation2 + $0x8] sm:$0xff]
      %v700 = vld [vmem:[#allocation2 + $0x10] sm:$0xff]
      %v701 = vld [vmem:[#allocation2 + $0x18] sm:$0xff]
      %706 = vrot.lane.b32.xlu0 %v698, 18
      %v707 = vpop.permute.xlu0 %706
      %708 = vrot.lane.b32.xlu0 %v699, 18
      %v709 = vpop.permute.xlu0 %708
      %710 = vrot.lane.b32.xlu0 %v700, 18
      %v711 = vpop.permute.xlu0 %710
      %712 = vrot.lane.b32.xlu0 %v701, 18
      %v713 = vpop.permute.xlu0 %712
      %v714 = vsel %vm295, %v707, %v709
      %v715 = vsel %vm295, %v709, %v711
      %v716 = vsel %vm295, %v711, %v713
      %720 = vst [vmem:[#allocation4 + $0x18] sm:$0xff] %v714
      %721 = vst [vmem:[#allocation4 + $0x20] sm:$0xff] %v715
      %722 = vst [vmem:[#allocation4 + $0x28] sm:$0xff] %v716
      %v723 = vld [vmem:[#allocation2] sm:$0xff]
      %v724 = vld [vmem:[#allocation2 + $0x8] sm:$0xff]
      %v725 = vld [vmem:[#allocation2 + $0x10] sm:$0xff]
      %v726 = vld [vmem:[#allocation2 + $0x18] sm:$0xff]
      %731 = vrot.lane.b32.xlu0 %v723, 17
      %v732 = vpop.permute.xlu0 %731
      %733 = vrot.lane.b32.xlu0 %v724, 17
      %v734 = vpop.permute.xlu0 %733
      %735 = vrot.lane.b32.xlu0 %v725, 17
      %v736 = vpop.permute.xlu0 %735
      %737 = vrot.lane.b32.xlu0 %v726, 17
      %v738 = vpop.permute.xlu0 %737
      %v739 = vsel %vm321, %v732, %v734
      %v740 = vsel %vm321, %v734, %v736
      %v741 = vsel %vm321, %v736, %v738
      %745 = vst [vmem:[#allocation4 + $0x30] sm:$0xff] %v739
      %746 = vst [vmem:[#allocation4 + $0x38] sm:$0xff] %v740
      %747 = vst [vmem:[#allocation4 + $0x40] sm:$0xff] %v741
      %v748 = vld [vmem:[#allocation2] sm:$0xff]
      %v749 = vld [vmem:[#allocation2 + $0x8] sm:$0xff]
      %v750 = vld [vmem:[#allocation2 + $0x10] sm:$0xff]
      %v751 = vld [vmem:[#allocation2 + $0x18] sm:$0xff]
      %756 = vrot.lane.b32.xlu0 %v748, 1
      %v757 = vpop.permute.xlu0 %756
      %758 = vrot.lane.b32.xlu0 %v749, 1
      %v759 = vpop.permute.xlu0 %758
      %760 = vrot.lane.b32.xlu0 %v750, 1
      %v761 = vpop.permute.xlu0 %760
      %762 = vrot.lane.b32.xlu0 %v751, 1
      %v763 = vpop.permute.xlu0 %762
      %v764 = vsel %vm347, %v757, %v759
      %v765 = vsel %vm347, %v759, %v761
      %v766 = vsel %vm347, %v761, %v763
      %770 = vst [vmem:[#allocation4 + $0x48] sm:$0xff] %v764
      %771 = vst [vmem:[#allocation4 + $0x50] sm:$0xff] %v765
      %772 = vst [vmem:[#allocation4 + $0x58] sm:$0xff] %v766
      %v773 = vld [vmem:[#allocation2 + $0x8] sm:$0xff]
      %v774 = vld [vmem:[#allocation2 + $0x10] sm:$0xff]
      %v775 = vld [vmem:[#allocation2 + $0x18] sm:$0xff]
      %776 = vst [vmem:[#allocation4 + $0x60] sm:$0xff] %v773
      %777 = vst [vmem:[#allocation4 + $0x68] sm:$0xff] %v774
      %778 = vst [vmem:[#allocation4 + $0x70] sm:$0xff] %v775
      %v779 = vld [vmem:[#allocation2 + $0x8] sm:$0xff]
      %v780 = vld [vmem:[#allocation2 + $0x10] sm:$0xff]
      %v781 = vld [vmem:[#allocation2 + $0x18] sm:$0xff]
      %v782 = vld [vmem:[#allocation2 + $0x20] sm:$0xff]
      %787 = vrot.lane.b32.xlu0 %v779, 127
      %v788 = vpop.permute.xlu0 %787
      %789 = vrot.lane.b32.xlu0 %v780, 127
      %v790 = vpop.permute.xlu0 %789
      %791 = vrot.lane.b32.xlu0 %v781, 127
      %v792 = vpop.permute.xlu0 %791
      %793 = vrot.lane.b32.xlu0 %v782, 127
      %v794 = vpop.permute.xlu0 %793
      %v795 = vsel %vm379, %v788, %v790
      %v796 = vsel %vm379, %v790, %v792
      %v797 = vsel %vm379, %v792, %v794
      %801 = vst [vmem:[#allocation4 + $0x78] sm:$0xff] %v795
      %802 = vst [vmem:[#allocation4 + $0x80] sm:$0xff] %v796
      %803 = vst [vmem:[#allocation4 + $0x88] sm:$0xff] %v797
      %v804 = vld [vmem:[#allocation2 + $0x8] sm:$0xff]
      %v805 = vld [vmem:[#allocation2 + $0x10] sm:$0xff]
      %v806 = vld [vmem:[#allocation2 + $0x18] sm:$0xff]
      %v807 = vld [vmem:[#allocation2 + $0x20] sm:$0xff]
      %812 = vrot.lane.b32.xlu0 %v804, 111
      %v813 = vpop.permute.xlu0 %812
      %814 = vrot.lane.b32.xlu0 %v805, 111
      %v815 = vpop.permute.xlu0 %814
      %816 = vrot.lane.b32.xlu0 %v806, 111
      %v817 = vpop.permute.xlu0 %816
      %818 = vrot.lane.b32.xlu0 %v807, 111
      %v819 = vpop.permute.xlu0 %818
      %v820 = vsel %vm405, %v813, %v815
      %v821 = vsel %vm405, %v815, %v817
      %v822 = vsel %vm405, %v817, %v819
      %826 = vst [vmem:[#allocation4 + $0x90] sm:$0xff] %v820
      %827 = vst [vmem:[#allocation4 + $0x98] sm:$0xff] %v821
      %828 = vst [vmem:[#allocation4 + $0xa0] sm:$0xff] %v822
      %v829 = vld [vmem:[#allocation2 + $0x8] sm:$0xff]
      %v830 = vld [vmem:[#allocation2 + $0x10] sm:$0xff]
      %v831 = vld [vmem:[#allocation2 + $0x18] sm:$0xff]
      %v832 = vld [vmem:[#allocation2 + $0x20] sm:$0xff]
      %837 = vrot.lane.b32.xlu0 %v829, 110
      %v838 = vpop.permute.xlu0 %837
      %839 = vrot.lane.b32.xlu0 %v830, 110
      %v840 = vpop.permute.xlu0 %839
      %841 = vrot.lane.b32.xlu0 %v831, 110
      %v842 = vpop.permute.xlu0 %841
      %843 = vrot.lane.b32.xlu0 %v832, 110
      %v844 = vpop.permute.xlu0 %843
      %v845 = vsel %vm431, %v838, %v840
      %v846 = vsel %vm431, %v840, %v842
      %v847 = vsel %vm431, %v842, %v844
      %851 = vst [vmem:[#allocation4 + $0xa8] sm:$0xff] %v845
      %852 = vst [vmem:[#allocation4 + $0xb0] sm:$0xff] %v846
      %853 = vst [vmem:[#allocation4 + $0xb8] sm:$0xff] %v847
      %v854 = vld [vmem:[#allocation2 + $0x8] sm:$0xff]
      %v855 = vld [vmem:[#allocation2 + $0x10] sm:$0xff]
      %v856 = vld [vmem:[#allocation2 + $0x18] sm:$0xff]
      %v857 = vld [vmem:[#allocation2 + $0x20] sm:$0xff]
      %862 = vrot.lane.b32.xlu0 %v854, 109
      %v863 = vpop.permute.xlu0 %862
      %864 = vrot.lane.b32.xlu0 %v855, 109
      %v865 = vpop.permute.xlu0 %864
      %866 = vrot.lane.b32.xlu0 %v856, 109
      %v867 = vpop.permute.xlu0 %866
      %868 = vrot.lane.b32.xlu0 %v857, 109
      %v869 = vpop.permute.xlu0 %868
      %v870 = vsel %vm457, %v863, %v865
      %v871 = vsel %vm457, %v865, %v867
      %v872 = vsel %vm457, %v867, %v869
      %876 = vst [vmem:[#allocation4 + $0xc0] sm:$0xff] %v870
      %877 = vst [vmem:[#allocation4 + $0xc8] sm:$0xff] %v871
      %878 = vst [vmem:[#allocation4 + $0xd0] sm:$0xff] %v872
      %v879 = vld [vmem:[%s4] sm:$0xff]
      %v880 = vld [vmem:[#allocation4] sm:$0xff]
      %v881 = vld [vmem:[#allocation4 + $0x8] sm:$0xff]
      %v882 = vld [vmem:[#allocation4 + $0x10] sm:$0xff]
      %v883 = vld [vmem:[#allocation4 + $0x18] sm:$0xff]
      %v884 = vld [vmem:[#allocation4 + $0x20] sm:$0xff]
      %v885 = vld [vmem:[#allocation4 + $0x28] sm:$0xff]
      %v886 = vld [vmem:[#allocation4 + $0x30] sm:$0xff]
      %v887 = vld [vmem:[#allocation4 + $0x38] sm:$0xff]
      %v888 = vld [vmem:[#allocation4 + $0x40] sm:$0xff]
      %v889 = vld [vmem:[#allocation4 + $0x48] sm:$0xff]
      %v890 = vld [vmem:[#allocation4 + $0x50] sm:$0xff]
      %v891 = vld [vmem:[#allocation4 + $0x58] sm:$0xff]
      %v892 = vld [vmem:[#allocation4 + $0x60] sm:$0xff]
      %v893 = vld [vmem:[#allocation4 + $0x68] sm:$0xff]
      %v894 = vld [vmem:[#allocation4 + $0x70] sm:$0xff]
      %v895 = vld [vmem:[#allocation4 + $0x78] sm:$0xff]
      %v896 = vld [vmem:[#allocation4 + $0x80] sm:$0xff]
      %v897 = vld [vmem:[#allocation4 + $0x88] sm:$0xff]
      %v898 = vld [vmem:[#allocation4 + $0x90] sm:$0xff]
      %v899 = vld [vmem:[#allocation4 + $0x98] sm:$0xff]
      %v900 = vld [vmem:[#allocation4 + $0xa0] sm:$0xff]
      %v901 = vld [vmem:[#allocation4 + $0xa8] sm:$0xff]
      %v902 = vld [vmem:[#allocation4 + $0xb0] sm:$0xff]
      %v903 = vld [vmem:[#allocation4 + $0xb8] sm:$0xff]
      %v904 = vld [vmem:[#allocation4 + $0xc0] sm:$0xff]
      %v905 = vld [vmem:[#allocation4 + $0xc8] sm:$0xff]
      %v906 = vld [vmem:[#allocation4 + $0xd0] sm:$0xff]
      %v907 = vld [vmem:[%s5] sm:$0xff]
      %909 = vset.pattern.permute.xlu0 0
      %910 = vperm.xlu0 %909, %v907
      %v911 = vpop.permute.xlu0 %910
      %v914 = vsel %vm501, %v879, 0
      %916 = vmatprep.subr.mxu0 %v881
      %917 = vmatpush1.msra.mxu0 %v880
      %918 = vmatprep.subr.mxu0 %v884
      %919 = vmatpush1.msra.mxu0 %v883
      %920 = vmatprep.subr.mxu0 %v887
      %921 = vmatpush1.msra.mxu0 %v886
      %922 = vmatprep.subr.mxu0 %v890
      %923 = vmatpush1.msra.mxu0 %v889
      %924 = vmatprep.subr.mxu0 %v893
      %925 = vmatpush1.msra.mxu0 %v892
      %926 = vmatprep.subr.mxu0 %v896
      %927 = vmatpush1.msra.mxu0 %v895
      %928 = vmatprep.subr.mxu0 %v899
      %929 = vmatpush1.msra.mxu0 %v898
      %930 = vmatprep.subr.mxu0 %v902
      %931 = vmatpush1.msra.mxu0 %v901
      %932 = vmatprep.subr.mxu0 %v905
      %933 = vmatpush1.msra.mxu0 %v904
      %934 = vmatprep.subr.mxu0 0.0
      %935 = vmatpush1.msra.mxu0 0.0
      %936 = vmatprep.subr.mxu0 0.0
      %937 = vmatpush1.msra.mxu0 0.0
      %938 = vmatprep.subr.mxu0 0.0
      %939 = vmatpush1.msra.mxu0 0.0
      %940 = vmatprep.subr.mxu0 0.0
      %941 = vmatpush1.msra.mxu0 0.0
      %942 = vmatprep.subr.mxu0 0.0
      %943 = vmatpush1.msra.mxu0 0.0
      %944 = vmatprep.subr.mxu0 0.0
      %945 = vmatpush1.msra.mxu0 0.0
      %946 = vmatprep.subr.mxu0 0.0
      %947 = vmatpush1.msra.mxu0 0.0
      %948 = vmatprep.subr.mxu0 0.0
      %949 = vmatpush1.msra.mxu0 0.0
      %950 = vmatprep.subr.mxu0 0.0
      %951 = vmatpush1.msra.mxu0 0.0
      %952 = vmatprep.subr.mxu0 0.0
      %953 = vmatpush1.msra.mxu0 0.0
      %954 = vmatprep.subr.mxu0 0.0
      %955 = vmatpush1.msra.mxu0 0.0
      %956 = vmatprep.subr.mxu0 0.0
      %957 = vmatpush1.msra.mxu0 0.0
      %958 = vmatprep.subr.mxu0 0.0
      %959 = vmatpush1.msra.mxu0 0.0
      %960 = vmatprep.subr.mxu0 0.0
      %961 = vmatpush1.msra.mxu0 0.0
      %962 = vmatprep.subr.mxu0 0.0
      %963 = vmatpush1.msra.mxu0 0.0
      %964 = vmatprep.subr.mxu0 0.0
      %965 = vmatpush1.msra.mxu0 0.0
      %966 = vmatprep.subr.mxu0 0.0
      %967 = vmatpush1.msra.mxu0 0.0
      %968 = vmatprep.subr.mxu0 0.0
      %969 = vmatpush1.msra.mxu0 0.0
      %970 = vmatprep.subr.mxu0 0.0
      %971 = vmatpush1.msra.mxu0 0.0
      %972 = vmatprep.subr.mxu0 0.0
      %973 = vmatpush1.msra.mxu0 0.0
      %974 = vmatprep.subr.mxu0 0.0
      %975 = vmatpush1.msra.mxu0 0.0
      %976 = vmatprep.subr.mxu0 0.0
      %977 = vmatpush1.msra.mxu0 0.0
      %978 = vmatprep.subr.mxu0 0.0
      %979 = vmatpush1.msra.mxu0 0.0
      %980 = vmatprep.mubr.f32.mxu0 0.0
      %981 = vmatmul.mubr.f32.gmra.mrb[0].mxu0 %v914
      %v982 = vpop.f32.mrb[0].mxu0
      %v983 = vadd.f32 %v911, %v982
      %v984 = vpop.f32.mrb[0].mxu0
      %v985 = vadd.f32 %v911, %v984
      %986 = vdwg.mxu0
      %987 = vmatprep.subr.mxu0 0.0
      %988 = vmatpush1.msra.mxu0 %v882
      %989 = vmatprep.subr.mxu0 0.0
      %990 = vmatpush1.msra.mxu0 %v885
      %991 = vmatprep.subr.mxu0 0.0
      %992 = vmatpush1.msra.mxu0 %v888
      %993 = vmatprep.subr.mxu0 0.0
      %994 = vmatpush1.msra.mxu0 %v891
      %995 = vmatprep.subr.mxu0 0.0
      %996 = vmatpush1.msra.mxu0 %v894
      %997 = vmatprep.subr.mxu0 0.0
      %998 = vmatpush1.msra.mxu0 %v897
      %999 = vmatprep.subr.mxu0 0.0
      %1000 = vmatpush1.msra.mxu0 %v900
      %1001 = vmatprep.subr.mxu0 0.0
      %1002 = vmatpush1.msra.mxu0 %v903
      %1003 = vmatprep.subr.mxu0 0.0
      %1004 = vmatpush1.msra.mxu0 %v906
      %1005 = vmatprep.subr.mxu0 0.0
      %1006 = vmatpush1.msra.mxu0 0.0
      %1007 = vmatprep.subr.mxu0 0.0
      %1008 = vmatpush1.msra.mxu0 0.0
      %1009 = vmatprep.subr.mxu0 0.0
      %1010 = vmatpush1.msra.mxu0 0.0
      %1011 = vmatprep.subr.mxu0 0.0
      %1012 = vmatpush1.msra.mxu0 0.0
      %1013 = vmatprep.subr.mxu0 0.0
      %1014 = vmatpush1.msra.mxu0 0.0
      %1015 = vmatprep.subr.mxu0 0.0
      %1016 = vmatpush1.msra.mxu0 0.0
      %1017 = vmatprep.subr.mxu0 0.0
      %1018 = vmatpush1.msra.mxu0 0.0
      %1019 = vmatprep.subr.mxu0 0.0
      %1020 = vmatpush1.msra.mxu0 0.0
      %1021 = vmatprep.subr.mxu0 0.0
      %1022 = vmatpush1.msra.mxu0 0.0
      %1023 = vmatprep.subr.mxu0 0.0
      %1024 = vmatpush1.msra.mxu0 0.0
      %1025 = vmatprep.subr.mxu0 0.0
      %1026 = vmatpush1.msra.mxu0 0.0
      %1027 = vmatprep.subr.mxu0 0.0
      %1028 = vmatpush1.msra.mxu0 0.0
      %1029 = vmatprep.subr.mxu0 0.0
      %1030 = vmatpush1.msra.mxu0 0.0
      %1031 = vmatprep.subr.mxu0 0.0
      %1032 = vmatpush1.msra.mxu0 0.0
      %1033 = vmatprep.subr.mxu0 0.0
      %1034 = vmatpush1.msra.mxu0 0.0
      %1035 = vmatprep.subr.mxu0 0.0
      %1036 = vmatpush1.msra.mxu0 0.0
      %1037 = vmatprep.subr.mxu0 0.0
      %1038 = vmatpush1.msra.mxu0 0.0
      %1039 = vmatprep.subr.mxu0 0.0
      %1040 = vmatpush1.msra.mxu0 0.0
      %1041 = vmatprep.subr.mxu0 0.0
      %1042 = vmatpush1.msra.mxu0 0.0
      %1043 = vmatprep.subr.mxu0 0.0
      %1044 = vmatpush1.msra.mxu0 0.0
      %1045 = vmatprep.subr.mxu0 0.0
      %1046 = vmatpush1.msra.mxu0 0.0
      %1047 = vmatprep.subr.mxu0 0.0
      %1048 = vmatpush1.msra.mxu0 0.0
      %1049 = vmatprep.subr.mxu0 0.0
      %1050 = vmatpush1.msra.mxu0 0.0
      %1051 = vmatprep.mubr.f32.mxu0 0.0
      %1052 = vmatmul.mubr.f32.gmra.mrb[0].mxu0 %v914
      %v1053 = vpop.f32.mrb[0].mxu0
      %v1054 = vadd.f32 %v911, %v1053
      %v1055 = vpop.f32.mrb[0].mxu0
      %1056 = vdwg.mxu0
      %v1057 = vmax.f32 %v983, 0.0
      %v1058 = vmax.f32 %v985, 0.0
      %v1059 = vmax.f32 %v1054, 0.0
      %1060 = vst [vmem:[%s251] sm:$0xff] %v1057
      %1061 = vst [vmem:[%s251 + $0x8] sm:$0xff] %v1058
      %1062 = vst [vmem:[%s251 + $0x10] sm:$0xff] %v1059
      %p1063 = scmp.lt.s32.totalorder %s17, 1
      %s1064 = scalar_select %p1063, %s17, 1
      %s1065 = smul.addr %s1064, 3
      %s1066 = smul.addr %s1065, 8
      %s1067 = scalar_lea.vmem %s6, %s1066
      // Predicated region
      $region45: #{double_conv.1} parent=43 // pred_check
        %p1068 = pneg %p166
      $region46: #{double_conv.1} parent=43 // pred_check_branch
        %1070 = sbr.rel (%p1068) target = $region48
      $region47: #{double_conv.1} parent=43 // pred_region
        _
      $region48: #{double_conv.1} parent=43 // pred_fallthru
        _
    $region44: #{double_conv.1} parent=5 // pred_fallthru
      _
    %p1071 = scmp.le.s32.totalorder 2, %s12
    // Predicated region
    $region49: #{double_conv.1} parent=5 // pred_check
      %p1072 = pneg %p1071
    $region50: #{double_conv.1} parent=5 // pred_check_branch
      %1074 = sbr.rel (%p1072) target = $region52
    $region51: #{double_conv.1} parent=5 // pred_region
      %s1075 = ssub.s32 %s12, 2
      // Predicated region
      $region53: #{double_conv.1} parent=51 // pred_check
        %p1076 = pneg %p172
      $region54: #{double_conv.1} parent=51 // pred_check_branch
        %1078 = sbr.rel (%p1076) target = $region56
      $region55: #{double_conv.1} parent=51 // pred_region
        %p1079 = scmp.lt.s32.totalorder %s18, 1
        %s1080 = scalar_select %p1079, %s18, 1
        %s1081 = smul.addr %s1080, 3
        %s1082 = smul.addr %s1081, 8
        %s1083 = scalar_lea.vmem %s6, %s1082
      $region56: #{double_conv.1} parent=51 // pred_fallthru
        _
    $region52: #{double_conv.1} parent=5 // pred_fallthru
      _
  $region6: #{double_conv.1} parent=0 // loop_footer
    %s16 = sadd.s32 1, %s12
  $region7: #{double_conv.1} parent=0 // loop_footer_branch
    %11 = sbr.rel target = $region3
  $region8: #{double_conv.1} parent=0 // loop_exit
    _

</llo_original>
